<compile_context>
chip_gen: v7x
topology: tpu7x:2x2x1
jax: 0.10.0
libtpu: 0.0.40
codegen_flags: <defaults>
</compile_context>

<pallas_src>
import functools

import jax
import jax.numpy as jnp
from jax.experimental import pallas as pl
from jax.experimental.pallas import tpu as pltpu


def _chan_layernorm_kernel(x_ref, g_ref, b_ref, o_ref, *, eps, n_chan):
    """x_ref/o_ref: (C, TR, L) VMEM block; g_ref/b_ref: (C,) f32 in SMEM."""
    inv_c = jnp.float32(1.0 / n_chan)

    # Channel mean: unrolled elementwise adds on full vregs (VPU only).
    acc = x_ref[0].astype(jnp.float32)
    for c in range(1, n_chan):
        acc = acc + x_ref[c].astype(jnp.float32)
    mean = acc * inv_c

    # Biased variance (matches torch.var(..., unbiased=False)); two-pass for
    # numerical robustness (cheap: operands already resident in VMEM/vregs).
    d = x_ref[0].astype(jnp.float32) - mean
    acc = d * d
    for c in range(1, n_chan):
        d = x_ref[c].astype(jnp.float32) - mean
        acc = acc + d * d
    var = acc * inv_c

    # eps added to std (outside the sqrt), exactly like the PyTorch module.
    inv_std = pl.reciprocal(jnp.sqrt(var) + jnp.float32(eps), approx=False)

    for c in range(n_chan):
        xc = x_ref[c].astype(jnp.float32)
        yc = (xc - mean) * inv_std * g_ref[c] + b_ref[c]
        o_ref[c] = yc.astype(o_ref.dtype)


def _pick_row_tile(n_rows, n_chan, lane, itemsize, target_bytes):
    """Largest divisor of n_rows that is a multiple of 8 (or n_rows itself)
    whose (C, tile_r, L) block fits target_bytes; smallest valid otherwise."""
    divs = set()
    i = 1
    while i * i <= n_rows:
        if n_rows % i == 0:
            divs.add(i)
            divs.add(n_rows // i)
        i += 1
    valid = sorted(d for d in divs if d % 8 == 0 or d == n_rows)
    fitting = [d for d in valid if n_chan * d * lane * itemsize <= target_bytes]
    return max(fitting) if fitting else min(valid)


def chan_layer_norm_3d(x, g, b, *, eps=1e-5, target_block_bytes=1 << 20):
    """x: (N, C, D, H, W); g, b: (1, C, 1, 1, 1). Returns same shape/dtype as x."""
    N, C, D, H, W = x.shape
    S = D * H * W

    # Free, contiguous reshape: spatial data onto (sublane, lane) axes.
    if S % 128 == 0:
        L = 128
        R = S // 128
    else:
        # TODO(synk): spatial sizes not divisible by 128 fall back to a single
        # full-width row per (n) block (correct, just not lane-tiled).
        L = S
        R = 1
    x4 = x.reshape(N, C, R, L)
    g1 = g.reshape(C).astype(jnp.float32)
    b1 = b.reshape(C).astype(jnp.float32)

    itemsize = jnp.dtype(x.dtype).itemsize
    tile_r = _pick_row_tile(R, C, L, itemsize, target_block_bytes)
    grid = (N, R // tile_r)

    kernel = functools.partial(_chan_layernorm_kernel, eps=eps, n_chan=C)

    out4 = pl.pallas_call(
        kernel,
        out_shape=jax.ShapeDtypeStruct((N, C, R, L), x.dtype),
        grid=grid,
        in_specs=[
            # N dim squeezed out of the kernel view -> kernel sees (C, tile_r, L).
            pl.BlockSpec((None, C, tile_r, L), lambda n, i: (n, 0, i, 0)),
            pl.BlockSpec(memory_space=pltpu.MemorySpace.SMEM),  # gamma (C,)
            pl.BlockSpec(memory_space=pltpu.MemorySpace.SMEM),  # beta  (C,)
        ],
        out_specs=pl.BlockSpec((None, C, tile_r, L), lambda n, i: (n, 0, i, 0)),
        compiler_params=pltpu.CompilerParams(
            dimension_semantics=("parallel", "parallel"),
            vmem_limit_bytes=32 * 1024 * 1024,
        ),
    )(x4, g1, b1)

    return out4.reshape(N, C, D, H, W)


def _reference(x, g, b, eps=1e-5):
    xf = x.astype(jnp.float32)
    mean = jnp.mean(xf, axis=1, keepdims=True)
    var = jnp.var(xf, axis=1, keepdims=True)  # biased (unbiased=False)
    std = jnp.sqrt(var)
    return ((xf - mean) / (std + eps) * g.astype(jnp.float32)
            + b.astype(jnp.float32)).astype(x.dtype)


if __name__ == "__main__":
    key = jax.random.PRNGKey(0)
    kx, kg, kb = jax.random.split(key, 3)

    N, C, D, H, W = 2, 4, 8, 16, 16
    x = jax.random.normal(kx, (N, C, D, H, W), dtype=jnp.float32)
    # Deterministic, non-trivial affine params to exercise the broadcast path.
    g = 1.0 + 0.1 * jax.random.normal(kg, (1, C, 1, 1, 1), dtype=jnp.float32)
    b = 0.1 * jax.random.normal(kb, (1, C, 1, 1, 1), dtype=jnp.float32)

    out = jax.block_until_ready(chan_layer_norm_3d(x, g, b, eps=1e-5))

    ref = _reference(x, g, b, eps=1e-5)
    assert out.shape == x.shape and out.dtype == x.dtype
    assert jnp.allclose(out, ref, atol=1e-5, rtol=1e-5), "mismatch vs reference"

    print("KERNEL_OK")
</pallas_src>

<mosaic_0001>
module attributes {stable_mosaic.version = 11 : i64} {
  func.func @_chan_layernorm_kernel(%arg0: i32, %arg1: i32, %arg2: memref<1x4x16x128xf32, #tpu.memory_space<vmem>>, %arg3: memref<4xf32, #tpu.memory_space<smem>>, %arg4: memref<4xf32, #tpu.memory_space<smem>>, %arg5: memref<1x4x16x128xf32, #tpu.memory_space<vmem>>) attributes {dimension_semantics = [#tpu.dimension_semantics<parallel>, #tpu.dimension_semantics<parallel>], iteration_bounds = array<i64: 2, 1>, scalar_prefetch = 0 : i64, scratch_operands = 0 : i64, tpu.core_type = #tpu.core_type<tc>, window_params = [{transform_indices = @transform_0, window_bounds = array<i64: 1, 4, 16, 128>}, {transform_indices = @transform_1, window_bounds = array<i64: 4>}, {transform_indices = @transform_2, window_bounds = array<i64: 4>}, {transform_indices = @transform_3, window_bounds = array<i64: 1, 4, 16, 128>}]} {
    %c0 = arith.constant 0 : index
    %c0_0 = arith.constant 0 : index
    %c0_1 = arith.constant 0 : index
    %c0_2 = arith.constant 0 : index
    %0 = vector.load %arg2[%c0, %c0_0, %c0_1, %c0_2] : memref<1x4x16x128xf32, #tpu.memory_space<vmem>>, vector<1x1x16x128xf32>
    %1 = vector.shape_cast %0 : vector<1x1x16x128xf32> to vector<16x128xf32>
    %c0_3 = arith.constant 0 : index
    %c1 = arith.constant 1 : index
    %c0_4 = arith.constant 0 : index
    %c0_5 = arith.constant 0 : index
    %2 = vector.load %arg2[%c0_3, %c1, %c0_4, %c0_5] : memref<1x4x16x128xf32, #tpu.memory_space<vmem>>, vector<1x1x16x128xf32>
    %3 = vector.shape_cast %2 : vector<1x1x16x128xf32> to vector<16x128xf32>
    %4 = arith.addf %1, %3 : vector<16x128xf32>
    %c0_6 = arith.constant 0 : index
    %c2 = arith.constant 2 : index
    %c0_7 = arith.constant 0 : index
    %c0_8 = arith.constant 0 : index
    %5 = vector.load %arg2[%c0_6, %c2, %c0_7, %c0_8] : memref<1x4x16x128xf32, #tpu.memory_space<vmem>>, vector<1x1x16x128xf32>
    %6 = vector.shape_cast %5 : vector<1x1x16x128xf32> to vector<16x128xf32>
    %7 = arith.addf %4, %6 : vector<16x128xf32>
    %c0_9 = arith.constant 0 : index
    %c3 = arith.constant 3 : index
    %c0_10 = arith.constant 0 : index
    %c0_11 = arith.constant 0 : index
    %8 = vector.load %arg2[%c0_9, %c3, %c0_10, %c0_11] : memref<1x4x16x128xf32, #tpu.memory_space<vmem>>, vector<1x1x16x128xf32>
    %9 = vector.shape_cast %8 : vector<1x1x16x128xf32> to vector<16x128xf32>
    %10 = arith.addf %7, %9 : vector<16x128xf32>
    %cst = arith.constant 2.500000e-01 : f32
    %11 = vector.broadcast %cst : f32 to vector<16x128xf32>
    %12 = arith.mulf %10, %11 : vector<16x128xf32>
    %c0_12 = arith.constant 0 : index
    %c0_13 = arith.constant 0 : index
    %c0_14 = arith.constant 0 : index
    %c0_15 = arith.constant 0 : index
    %13 = vector.load %arg2[%c0_12, %c0_13, %c0_14, %c0_15] : memref<1x4x16x128xf32, #tpu.memory_space<vmem>>, vector<1x1x16x128xf32>
    %14 = vector.shape_cast %13 : vector<1x1x16x128xf32> to vector<16x128xf32>
    %15 = arith.subf %14, %12 : vector<16x128xf32>
    %16 = arith.mulf %15, %15 : vector<16x128xf32>
    %c0_16 = arith.constant 0 : index
    %c1_17 = arith.constant 1 : index
    %c0_18 = arith.constant 0 : index
    %c0_19 = arith.constant 0 : index
    %17 = vector.load %arg2[%c0_16, %c1_17, %c0_18, %c0_19] : memref<1x4x16x128xf32, #tpu.memory_space<vmem>>, vector<1x1x16x128xf32>
    %18 = vector.shape_cast %17 : vector<1x1x16x128xf32> to vector<16x128xf32>
    %19 = arith.subf %18, %12 : vector<16x128xf32>
    %20 = arith.mulf %19, %19 : vector<16x128xf32>
    %21 = arith.addf %16, %20 : vector<16x128xf32>
    %c0_20 = arith.constant 0 : index
    %c2_21 = arith.constant 2 : index
    %c0_22 = arith.constant 0 : index
    %c0_23 = arith.constant 0 : index
    %22 = vector.load %arg2[%c0_20, %c2_21, %c0_22, %c0_23] : memref<1x4x16x128xf32, #tpu.memory_space<vmem>>, vector<1x1x16x128xf32>
    %23 = vector.shape_cast %22 : vector<1x1x16x128xf32> to vector<16x128xf32>
    %24 = arith.subf %23, %12 : vector<16x128xf32>
    %25 = arith.mulf %24, %24 : vector<16x128xf32>
    %26 = arith.addf %21, %25 : vector<16x128xf32>
    %c0_24 = arith.constant 0 : index
    %c3_25 = arith.constant 3 : index
    %c0_26 = arith.constant 0 : index
    %c0_27 = arith.constant 0 : index
    %27 = vector.load %arg2[%c0_24, %c3_25, %c0_26, %c0_27] : memref<1x4x16x128xf32, #tpu.memory_space<vmem>>, vector<1x1x16x128xf32>
    %28 = vector.shape_cast %27 : vector<1x1x16x128xf32> to vector<16x128xf32>
    %29 = arith.subf %28, %12 : vector<16x128xf32>
    %30 = arith.mulf %29, %29 : vector<16x128xf32>
    %31 = arith.addf %26, %30 : vector<16x128xf32>
    %cst_28 = arith.constant 2.500000e-01 : f32
    %32 = vector.broadcast %cst_28 : f32 to vector<16x128xf32>
    %33 = arith.mulf %31, %32 : vector<16x128xf32>
    %34 = math.sqrt %33 : vector<16x128xf32>
    %cst_29 = arith.constant 9.99999974E-6 : f32
    %35 = vector.broadcast %cst_29 : f32 to vector<16x128xf32>
    %36 = arith.addf %34, %35 : vector<16x128xf32>
    %37 = tpu.reciprocal %36 : vector<16x128xf32> -> vector<16x128xf32>
    %c0_30 = arith.constant 0 : index
    %c0_31 = arith.constant 0 : index
    %c0_32 = arith.constant 0 : index
    %c0_33 = arith.constant 0 : index
    %38 = vector.load %arg2[%c0_30, %c0_31, %c0_32, %c0_33] : memref<1x4x16x128xf32, #tpu.memory_space<vmem>>, vector<1x1x16x128xf32>
    %39 = vector.shape_cast %38 : vector<1x1x16x128xf32> to vector<16x128xf32>
    %40 = arith.subf %39, %12 : vector<16x128xf32>
    %41 = arith.mulf %40, %37 : vector<16x128xf32>
    %c0_34 = arith.constant 0 : index
    %42 = memref.load %arg3[%c0_34] : memref<4xf32, #tpu.memory_space<smem>>
    %43 = vector.broadcast %42 : f32 to vector<16x128xf32>
    %44 = arith.mulf %41, %43 : vector<16x128xf32>
    %c0_35 = arith.constant 0 : index
    %45 = memref.load %arg4[%c0_35] : memref<4xf32, #tpu.memory_space<smem>>
    %46 = vector.broadcast %45 : f32 to vector<16x128xf32>
    %47 = arith.addf %44, %46 : vector<16x128xf32>
    %c0_36 = arith.constant 0 : index
    %c0_37 = arith.constant 0 : index
    %c0_38 = arith.constant 0 : index
    %c0_39 = arith.constant 0 : index
    %48 = vector.load %arg5[%c0_36, %c0_37, %c0_38, %c0_39] : memref<1x4x16x128xf32, #tpu.memory_space<vmem>>, vector<1x1x16x128xf32>
    %49 = vector.shape_cast %48 : vector<1x1x16x128xf32> to vector<16x128xf32>
    %50 = vector.shape_cast %47 : vector<16x128xf32> to vector<1x1x16x128xf32>
    tpu.vector_store %arg5[%c0_36, %c0_37, %c0_38, %c0_39], %50 {strides = array<i32>} : memref<1x4x16x128xf32, #tpu.memory_space<vmem>>, vector<1x1x16x128xf32>,
    %c0_40 = arith.constant 0 : index
    %c1_41 = arith.constant 1 : index
    %c0_42 = arith.constant 0 : index
    %c0_43 = arith.constant 0 : index
    %51 = vector.load %arg2[%c0_40, %c1_41, %c0_42, %c0_43] : memref<1x4x16x128xf32, #tpu.memory_space<vmem>>, vector<1x1x16x128xf32>
    %52 = vector.shape_cast %51 : vector<1x1x16x128xf32> to vector<16x128xf32>
    %53 = arith.subf %52, %12 : vector<16x128xf32>
    %54 = arith.mulf %53, %37 : vector<16x128xf32>
    %c1_44 = arith.constant 1 : index
    %55 = memref.load %arg3[%c1_44] : memref<4xf32, #tpu.memory_space<smem>>
    %56 = vector.broadcast %55 : f32 to vector<16x128xf32>
    %57 = arith.mulf %54, %56 : vector<16x128xf32>
    %c1_45 = arith.constant 1 : index
    %58 = memref.load %arg4[%c1_45] : memref<4xf32, #tpu.memory_space<smem>>
    %59 = vector.broadcast %58 : f32 to vector<16x128xf32>
    %60 = arith.addf %57, %59 : vector<16x128xf32>
    %c0_46 = arith.constant 0 : index
    %c1_47 = arith.constant 1 : index
    %c0_48 = arith.constant 0 : index
    %c0_49 = arith.constant 0 : index
    %61 = vector.load %arg5[%c0_46, %c1_47, %c0_48, %c0_49] : memref<1x4x16x128xf32, #tpu.memory_space<vmem>>, vector<1x1x16x128xf32>
    %62 = vector.shape_cast %61 : vector<1x1x16x128xf32> to vector<16x128xf32>
    %63 = vector.shape_cast %60 : vector<16x128xf32> to vector<1x1x16x128xf32>
    tpu.vector_store %arg5[%c0_46, %c1_47, %c0_48, %c0_49], %63 {strides = array<i32>} : memref<1x4x16x128xf32, #tpu.memory_space<vmem>>, vector<1x1x16x128xf32>,
    %c0_50 = arith.constant 0 : index
    %c2_51 = arith.constant 2 : index
    %c0_52 = arith.constant 0 : index
    %c0_53 = arith.constant 0 : index
    %64 = vector.load %arg2[%c0_50, %c2_51, %c0_52, %c0_53] : memref<1x4x16x128xf32, #tpu.memory_space<vmem>>, vector<1x1x16x128xf32>
    %65 = vector.shape_cast %64 : vector<1x1x16x128xf32> to vector<16x128xf32>
    %66 = arith.subf %65, %12 : vector<16x128xf32>
    %67 = arith.mulf %66, %37 : vector<16x128xf32>
    %c2_54 = arith.constant 2 : index
    %68 = memref.load %arg3[%c2_54] : memref<4xf32, #tpu.memory_space<smem>>
    %69 = vector.broadcast %68 : f32 to vector<16x128xf32>
    %70 = arith.mulf %67, %69 : vector<16x128xf32>
    %c2_55 = arith.constant 2 : index
    %71 = memref.load %arg4[%c2_55] : memref<4xf32, #tpu.memory_space<smem>>
    %72 = vector.broadcast %71 : f32 to vector<16x128xf32>
    %73 = arith.addf %70, %72 : vector<16x128xf32>
    %c0_56 = arith.constant 0 : index
    %c2_57 = arith.constant 2 : index
    %c0_58 = arith.constant 0 : index
    %c0_59 = arith.constant 0 : index
    %74 = vector.load %arg5[%c0_56, %c2_57, %c0_58, %c0_59] : memref<1x4x16x128xf32, #tpu.memory_space<vmem>>, vector<1x1x16x128xf32>
    %75 = vector.shape_cast %74 : vector<1x1x16x128xf32> to vector<16x128xf32>
    %76 = vector.shape_cast %73 : vector<16x128xf32> to vector<1x1x16x128xf32>
    tpu.vector_store %arg5[%c0_56, %c2_57, %c0_58, %c0_59], %76 {strides = array<i32>} : memref<1x4x16x128xf32, #tpu.memory_space<vmem>>, vector<1x1x16x128xf32>,
    %c0_60 = arith.constant 0 : index
    %c3_61 = arith.constant 3 : index
    %c0_62 = arith.constant 0 : index
    %c0_63 = arith.constant 0 : index
    %77 = vector.load %arg2[%c0_60, %c3_61, %c0_62, %c0_63] : memref<1x4x16x128xf32, #tpu.memory_space<vmem>>, vector<1x1x16x128xf32>
    %78 = vector.shape_cast %77 : vector<1x1x16x128xf32> to vector<16x128xf32>
    %79 = arith.subf %78, %12 : vector<16x128xf32>
    %80 = arith.mulf %79, %37 : vector<16x128xf32>
    %c3_64 = arith.constant 3 : index
    %81 = memref.load %arg3[%c3_64] : memref<4xf32, #tpu.memory_space<smem>>
    %82 = vector.broadcast %81 : f32 to vector<16x128xf32>
    %83 = arith.mulf %80, %82 : vector<16x128xf32>
    %c3_65 = arith.constant 3 : index
    %84 = memref.load %arg4[%c3_65] : memref<4xf32, #tpu.memory_space<smem>>
    %85 = vector.broadcast %84 : f32 to vector<16x128xf32>
    %86 = arith.addf %83, %85 : vector<16x128xf32>
    %c0_66 = arith.constant 0 : index
    %c3_67 = arith.constant 3 : index
    %c0_68 = arith.constant 0 : index
    %c0_69 = arith.constant 0 : index
    %87 = vector.load %arg5[%c0_66, %c3_67, %c0_68, %c0_69] : memref<1x4x16x128xf32, #tpu.memory_space<vmem>>, vector<1x1x16x128xf32>
    %88 = vector.shape_cast %87 : vector<1x1x16x128xf32> to vector<16x128xf32>
    %89 = vector.shape_cast %86 : vector<16x128xf32> to vector<1x1x16x128xf32>
    tpu.vector_store %arg5[%c0_66, %c3_67, %c0_68, %c0_69], %89 {strides = array<i32>} : memref<1x4x16x128xf32, #tpu.memory_space<vmem>>, vector<1x1x16x128xf32>,
    return
  }
  func.func @transform_0(%arg0: i32, %arg1: i32) -> (i32, i32, i32, i32) {
    %c0_i32 = arith.constant 0 : i32
    %c0_i32_0 = arith.constant 0 : i32
    %c0_i32_1 = arith.constant 0 : i32
    return %arg0, %c0_i32, %arg1, %c0_i32_0 : i32, i32, i32, i32
  }
  func.func @transform_1(%arg0: i32, %arg1: i32) -> i32 {
    %c0_i32 = arith.constant 0 : i32
    %c0_i32_0 = arith.constant 0 : i32
    return %c0_i32 : i32
  }
  func.func @transform_2(%arg0: i32, %arg1: i32) -> i32 {
    %c0_i32 = arith.constant 0 : i32
    %c0_i32_0 = arith.constant 0 : i32
    return %c0_i32 : i32
  }
  func.func @transform_3(%arg0: i32, %arg1: i32) -> (i32, i32, i32, i32) {
    %c0_i32 = arith.constant 0 : i32
    %c0_i32_0 = arith.constant 0 : i32
    %c0_i32_1 = arith.constant 0 : i32
    return %arg0, %c0_i32, %arg1, %c0_i32_0 : i32, i32, i32, i32
  }
}

</mosaic_0001>

<llo_original>
// kernel: tpu_custom_call.1
$region0: #{tpu_custom_call.1}
  #allocation0 [shape = 'u32[]', space=smem, size = 0x4, offset = 0x4, fixed_abs, tag = 'smem constant byte address 0x4 - core index']
  #allocation1 [shape = 'u32[144,128]{1,0:T(1,128)}', space=vmem, size = 0x12000, scoped, tag = 'internal scratch']
  %s0 = inlined_call_operand.hbm [shape: f32[2,4,16,128], index: 0, kind: input, shape index: {}]
  %s1 = inlined_call_operand.vmem [shape: f32[4], index: 1, kind: input, shape index: {}]
  %s2 = inlined_call_operand.vmem [shape: f32[4], index: 2, kind: input, shape index: {}]
  %s3 = inlined_call_operand.hbm [shape: f32[2,4,16,128], index: 3, kind: output, shape index: {}]
  %s4 = sld [smem:[#allocation0]]
  $region57: #{tpu_custom_call.1} parent=0
    _
  %s6 = ssub.s32 1, %s4
  %s7 = scalar_select 0, %s6, %s4
  $region1: #{tpu_custom_call.1} parent=0
    #allocation2 [shape = 'u8[65536]{0}', space=vmem, size = 0x10000, scoped, tag = 'input window, operand 0']
    #allocation3 [shape = 's32[2]{0}', space=sflag, size = 0x8, scoped, tag = 'scoped memory for tpu_custom_call.1']
    #allocation4 [shape = 's32[2]{0}', space=sflag, size = 0x8, scoped, tag = 'scoped memory for tpu_custom_call.1']
    #allocation5 [shape = 's32[2]{0}', space=sflag, size = 0x8, scoped, tag = 'scoped memory for tpu_custom_call.1']
    #allocation6 [shape = 'u8[512]{0}', space=smem, size = 0x200, scoped, tag = 'input window, operand 1, single buffered']
    #allocation7 [shape = 'u8[512]{0}', space=smem, size = 0x200, scoped, tag = 'input window, operand 2, single buffered']
    #allocation8 [shape = 's32[1]{0}', space=sflag, size = 0x4, scoped, tag = 'scoped memory for tpu_custom_call.1']
    #allocation9 [shape = 'u8[65536]{0}', space=vmem, size = 0x10000, scoped, tag = 'output window, operand 0']
    %8 = vsyncpa [#allocation3], 0
    %s9 = scalar_lea.sflag [#allocation3], 1
    %10 = vsyncpa %s9, 0
    %11 = vsyncpa [#allocation5], 0
    %12 = vsyncpa [#allocation8], 0
    %13 = vsyncpa [#allocation4], 0
    %s14 = scalar_lea.sflag [#allocation4], 1
    %15 = vsyncpa %s14, 0
    loop: start=0, step=1, limit=4
    $region2: #{tpu_custom_call.1} parent=1 // loop_pre_header
      _
    $region3: #{tpu_custom_call.1} parent=1 // loop_header
      %s17 = sphi 0, %s21
      %p18 = scmp.ge.s32.totalorder %s17, 4
      %s24 = sphi 0, %s36
      %s25 = sphi 0, %s32
      %s26 = sphi 0, %s24
      %s27 = sphi 0, %s25
      %s28 = sphi 0, %s26
      %s29 = sphi 0, %s27
      %s41 = sphi 0, %s43
      %s44 = sphi 0, %s41
      %s45 = sphi 0, %s44
      %s61 = sphi 0, %s45
      %s65 = sphi 0, %s65
      %s67 = sphi 0, %s65
      %s68 = sphi 0, %s67
      %s82 = sphi 0, %s68
      %s86 = sphi 0, %s86
      %s88 = sphi 0, %s86
      %s89 = sphi 0, %s88
      %s103 = sphi 0, %s89
      %s111 = sphi 0, %s113
      %s114 = sphi 0, %s111
      %s115 = sphi 0, %s114
      %s131 = sphi 0, %s115
    $region4: #{tpu_custom_call.1} parent=1 // loop_header_branch
      %20 = sbr.rel (%p18) target = $region8
    $region5: #{tpu_custom_call.1} parent=1 // loop_body
      %s22 = ssub.s32 %s17, 1
      %s23 = ssub.s32 %s17, 2
      %s30 = sadd.s32 1, %s25
      %p31 = scmp.ge.s32.totalorder %s30, 1
      %s32 = scalar_select %p31, 0, %s30
      %s33 = sadd.s32 1, %s24
      %s34 = scalar_select %p31, %s33, %s24
      %p35 = scmp.ge.s32.totalorder %s34, 2
      %s36 = scalar_select %p35, 0, %s34
      %s37 = ssub.s32 %s24, %s36
      %s38 = ssub.s32 %s25, %s32
      %s39 = sor.u32 %s37, %s38
      %p40 = scmp.eq.s32.totalorder %s39, 0
      %s42 = sadd.s32 %s41, 1
      %s43 = scalar_select %p40, %s41, %s42
      %p46 = pneg %p40
      %p47 = scmp.eq.s32.totalorder %s17, 1
      %p48 = por %p46, %p47
      %p49 = scmp.ne.s32.totalorder %s41, %s44
      %p50 = scmp.eq.s32.totalorder %s17, 0
      %p51 = por %p49, %p50
      %p52 = scmp.ne.s32.totalorder %s41, %s44
      %p53 = scmp.eq.s32.totalorder %s22, 1
      %p54 = por %p52, %p53
      %p55 = scmp.ne.s32.totalorder %s44, %s45
      %p56 = scmp.eq.s32.totalorder %s22, 0
      %p57 = por %p55, %p56
      %p58 = scmp.ne.s32.totalorder %s44, %s45
      %p59 = scmp.eq.s32.totalorder %s23, 1
      %p60 = por %p58, %p59
      %p62 = scmp.ne.s32.totalorder %s45, %s61
      %p63 = scmp.eq.s32.totalorder %s23, 0
      %p64 = por %p62, %p63
      %s66 = sadd.s32 %s65, 1
      %p69 = scmp.eq.s32.totalorder %s17, 1
      %p70 = scmp.ne.s32.totalorder %s65, %s67
      %p71 = scmp.eq.s32.totalorder %s17, 0
      %p72 = por %p70, %p71
      %p73 = scmp.ne.s32.totalorder %s65, %s67
      %p74 = scmp.eq.s32.totalorder %s22, 1
      %p75 = por %p73, %p74
      %p76 = scmp.ne.s32.totalorder %s67, %s68
      %p77 = scmp.eq.s32.totalorder %s22, 0
      %p78 = por %p76, %p77
      %p79 = scmp.ne.s32.totalorder %s67, %s68
      %p80 = scmp.eq.s32.totalorder %s23, 1
      %p81 = por %p79, %p80
      %p83 = scmp.ne.s32.totalorder %s68, %s82
      %p84 = scmp.eq.s32.totalorder %s23, 0
      %p85 = por %p83, %p84
      %s87 = sadd.s32 %s86, 1
      %p90 = scmp.eq.s32.totalorder %s17, 1
      %p91 = scmp.ne.s32.totalorder %s86, %s88
      %p92 = scmp.eq.s32.totalorder %s17, 0
      %p93 = por %p91, %p92
      %p94 = scmp.ne.s32.totalorder %s86, %s88
      %p95 = scmp.eq.s32.totalorder %s22, 1
      %p96 = por %p94, %p95
      %p97 = scmp.ne.s32.totalorder %s88, %s89
      %p98 = scmp.eq.s32.totalorder %s22, 0
      %p99 = por %p97, %p98
      %p100 = scmp.ne.s32.totalorder %s88, %s89
      %p101 = scmp.eq.s32.totalorder %s23, 1
      %p102 = por %p100, %p101
      %p104 = scmp.ne.s32.totalorder %s89, %s103
      %p105 = scmp.eq.s32.totalorder %s23, 0
      %p106 = por %p104, %p105
      %s107 = ssub.s32 %s24, %s36
      %s108 = ssub.s32 %s25, %s32
      %s109 = sor.u32 %s107, %s108
      %p110 = scmp.eq.s32.totalorder %s109, 0
      %s112 = sadd.s32 %s111, 1
      %s113 = scalar_select %p110, %s111, %s112
      %p116 = pneg %p110
      %p117 = scmp.eq.s32.totalorder %s17, 1
      %p118 = por %p116, %p117
      %p119 = scmp.ne.s32.totalorder %s111, %s114
      %p120 = scmp.eq.s32.totalorder %s17, 0
      %p121 = por %p119, %p120
      %p122 = scmp.ne.s32.totalorder %s111, %s114
      %p123 = scmp.eq.s32.totalorder %s22, 1
      %p124 = por %p122, %p123
      %p125 = scmp.ne.s32.totalorder %s114, %s115
      %p126 = scmp.eq.s32.totalorder %s22, 0
      %p127 = por %p125, %p126
      %p128 = scmp.ne.s32.totalorder %s114, %s115
      %p129 = scmp.eq.s32.totalorder %s23, 1
      %p130 = por %p128, %p129
      %p132 = scmp.ne.s32.totalorder %s115, %s131
      %p133 = scmp.eq.s32.totalorder %s23, 0
      %p134 = por %p132, %p133
      %p135 = scmp.le.s32.totalorder 1, %s17
      %p136 = scmp.lt.s32.totalorder %s17, 3
      %p137 = pnand %p135, %p136
      %p138 = pneg %p137
      // Predicated region
      $region9: #{tpu_custom_call.1} parent=5 // pred_check
        _
      $region10: #{tpu_custom_call.1} parent=5 // pred_check_branch
        %140 = sbr.rel (%p137) target = $region12
      $region11: #{tpu_custom_call.1} parent=5 // pred_region
        %s141 = ssub.s32 %s17, 1
        // Predicated region
        $region13: #{tpu_custom_call.1} parent=11 // pred_check
          %p142 = pneg %p78
        $region14: #{tpu_custom_call.1} parent=11 // pred_check_branch
          %144 = sbr.rel (%p142) target = $region16
        $region15: #{tpu_custom_call.1} parent=11 // pred_region
          %s146 = ssub.s32 16, 16
          %147 = vsyncadd [#allocation5], %s146
          %s149 = sshll.u32 %s1, 4
          %s150 = int_to_ptr.vmem [resolvable:$true] %s149
          %152 = dma.vmem_to_smem %s150, 16, [#allocation6], [#allocation5]
        $region16: #{tpu_custom_call.1} parent=11 // pred_fallthru
          _
        // Predicated region
        $region17: #{tpu_custom_call.1} parent=11 // pred_check
          %p153 = pneg %p99
        $region18: #{tpu_custom_call.1} parent=11 // pred_check_branch
          %155 = sbr.rel (%p153) target = $region20
        $region19: #{tpu_custom_call.1} parent=11 // pred_region
          %s157 = ssub.s32 16, 16
          %158 = vsyncadd [#allocation8], %s157
          %s160 = sshll.u32 %s2, 4
          %s161 = int_to_ptr.vmem [resolvable:$true] %s160
          %163 = dma.vmem_to_smem %s161, 16, [#allocation7], [#allocation8]
        $region20: #{tpu_custom_call.1} parent=11 // pred_fallthru
          _
      $region12: #{tpu_custom_call.1} parent=5 // pred_fallthru
        _
      %p164 = scmp.lt.s32.totalorder %s17, 2
      // Predicated region
      $region21: #{tpu_custom_call.1} parent=5 // pred_check
        %p165 = pneg %p164
      $region22: #{tpu_custom_call.1} parent=5 // pred_check_branch
        %167 = sbr.rel (%p165) target = $region24
      $region23: #{tpu_custom_call.1} parent=5 // pred_region
        // Predicated region
        $region25: #{tpu_custom_call.1} parent=23 // pred_check
          %p168 = pneg %p51
        $region26: #{tpu_custom_call.1} parent=23 // pred_check_branch
          %170 = sbr.rel (%p168) target = $region28
        $region27: #{tpu_custom_call.1} parent=23 // pred_region
          %s171 = sand.u32 %s41, 1
          %s172 = scalar_lea.sflag [#allocation3], %s171
          %s173 = sand.u32 %s41, 1
          %s174 = smul.addr %s173, 64
          %s175 = scalar_lea.vmem [#allocation2], %s174
          %s176 = smul.u32 2, %s25
          %s178 = ssub.s32 1024, 1024
          %179 = vsyncadd %s172, %s178
          %s180 = smul.addr %s24, 8
          %s181 = sadd.s32 %s176, %s180
          %s182 = smul.addr %s181, 128
          %s183 = scalar_lea.hbm %s0, %s182
          %s184 = sshll.u32 %s175, 4
          %s185 = int_to_ptr.vmem [resolvable:$true] %s184
          %190 = dma.hbm_to_vmem [thread:$0]  %s183, 1024, %s185, %s172, 128, 128, 8
        $region28: #{tpu_custom_call.1} parent=23 // pred_fallthru
          _
      $region24: #{tpu_custom_call.1} parent=5 // pred_fallthru
        _
      %p191 = scmp.le.s32.totalorder 1, %s17
      %p192 = scmp.lt.s32.totalorder %s17, 3
      %p193 = pnand %p191, %p192
      %p194 = pneg %p193
      // Predicated region
      $region29: #{tpu_custom_call.1} parent=5 // pred_check
        _
      $region30: #{tpu_custom_call.1} parent=5 // pred_check_branch
        %196 = sbr.rel (%p193) target = $region32
      $region31: #{tpu_custom_call.1} parent=5 // pred_region
        %s197 = ssub.s32 %s17, 1
        %s198 = sand.u32 %s44, 1
        %s199 = scalar_lea.sflag [#allocation3], %s198
        %s200 = sand.u32 %s44, 1
        %s201 = smul.addr %s200, 64
        %s202 = scalar_lea.vmem [#allocation2], %s201
        // Predicated region
        $region33: #{tpu_custom_call.1} parent=31 // pred_check
          %p203 = pneg %p57
        $region34: #{tpu_custom_call.1} parent=31 // pred_check_branch
          %205 = sbr.rel (%p203) target = $region36
        $region35: #{tpu_custom_call.1} parent=31 // pred_region
          %206 = dma.done %s199, 1024
        $region36: #{tpu_custom_call.1} parent=31 // pred_fallthru
          _
        // Predicated region
        $region37: #{tpu_custom_call.1} parent=31 // pred_check
          %p207 = pneg %p78
        $region38: #{tpu_custom_call.1} parent=31 // pred_check_branch
          %209 = sbr.rel (%p207) target = $region40
        $region39: #{tpu_custom_call.1} parent=31 // pred_region
          %210 = dma.done [#allocation5], 16
        $region40: #{tpu_custom_call.1} parent=31 // pred_fallthru
          _
        // Predicated region
        $region41: #{tpu_custom_call.1} parent=31 // pred_check
          %p211 = pneg %p99
        $region42: #{tpu_custom_call.1} parent=31 // pred_check_branch
          %213 = sbr.rel (%p211) target = $region44
        $region43: #{tpu_custom_call.1} parent=31 // pred_region
          %214 = dma.done [#allocation8], 16
        $region44: #{tpu_custom_call.1} parent=31 // pred_fallthru
          _
        %215 = sfence
        %s216 = sand.u32 %s44, 1
        %s217 = scalar_lea.sflag [#allocation3], %s216
        %s218 = sand.u32 %s44, 1
        %s219 = smul.addr %s218, 64
        %s220 = scalar_lea.vmem [#allocation2], %s219
        %p221 = pneg %p57
        %p222 = pneg %p54
        %p223 = pneg %p78
        %p224 = pneg %p75
        %p225 = pneg %p99
        %p226 = pneg %p96
        %p227 = pneg %p127
        %p228 = pneg %p124
        %s229 = sand.u32 %s114, 1
        %s230 = scalar_lea.sflag [#allocation4], %s229
        %s231 = sand.u32 %s114, 1
        %s232 = smul.addr %s231, 64
        %s233 = scalar_lea.vmem [#allocation9], %s232
        %s234 = smul.u32 2, %s27
        %s235 = smul.u32 2, %s27
        %v236 = vld [vmem:[%s202] sm:$0xff]
        %v237 = vld [vmem:[%s202 + $0x8] sm:$0xff]
        %s238 = scalar_lea.vmem %s202, 16 [#allocation2]
        %v239 = vld [vmem:[%s238] sm:$0xff]
        %v240 = vld [vmem:[%s238 + $0x8] sm:$0xff]
        %v241 = vadd.f32 %v236, %v239
        %v242 = vadd.f32 %v237, %v240
        %s243 = scalar_lea.vmem %s202, 32 [#allocation2]
        %v244 = vld [vmem:[%s243] sm:$0xff]
        %v245 = vld [vmem:[%s243 + $0x8] sm:$0xff]
        %v246 = vadd.f32 %v241, %v244
        %v247 = vadd.f32 %v242, %v245
        %s248 = scalar_lea.vmem %s202, 48 [#allocation2]
        %v249 = vld [vmem:[%s248] sm:$0xff]
        %v250 = vld [vmem:[%s248 + $0x8] sm:$0xff]
        %v251 = vadd.f32 %v246, %v249
        %v252 = vadd.f32 %v247, %v250
        %v253 = vmul.f32 %v251, 0.25
        %v254 = vmul.f32 %v252, 0.25
        %v255 = vsub.f32 %v236, %v253
        %v256 = vsub.f32 %v237, %v254
        %v257 = vmul.f32 %v255, %v255
        %v258 = vmul.f32 %v256, %v256
        %v259 = vsub.f32 %v239, %v253
        %v260 = vsub.f32 %v240, %v254
        %v261 = vmul.f32 %v259, %v259
        %v262 = vmul.f32 %v260, %v260
        %v263 = vadd.f32 %v257, %v261
        %v264 = vadd.f32 %v258, %v262
        %v265 = vsub.f32 %v244, %v253
        %v266 = vsub.f32 %v245, %v254
        %v267 = vmul.f32 %v265, %v265
        %v268 = vmul.f32 %v266, %v266
        %v269 = vadd.f32 %v263, %v267
        %v270 = vadd.f32 %v264, %v268
        %v271 = vsub.f32 %v249, %v253
        %v272 = vsub.f32 %v250, %v254
        %v273 = vmul.f32 %v271, %v271
        %v274 = vmul.f32 %v272, %v272
        %v275 = vadd.f32 %v269, %v273
        %v276 = vadd.f32 %v270, %v274
        %v277 = vmul.f32 %v275, 0.25
        %v278 = vmul.f32 %v276, 0.25
        %v279 = vrsqrt.pop %v277
        %v280 = vmul.f32 %v277, %v279
        %vm281 = vcmp.eq.f32.partialorder %v277, inf
        %v282 = vsel %vm281, %v277, %v280
        %vm283 = vcmp.eq.f32.partialorder %v277, 0.0
        %v284 = vand.u32 %v277, 2147483648
        %v285 = vsel %vm283, %v284, %v282
        %v286 = vrsqrt.pop %v278
        %v287 = vmul.f32 %v278, %v286
        %vm288 = vcmp.eq.f32.partialorder %v278, inf
        %v289 = vsel %vm288, %v278, %v287
        %vm290 = vcmp.eq.f32.partialorder %v278, 0.0
        %v291 = vand.u32 %v278, 2147483648
        %v292 = vsel %vm290, %v291, %v289
        %v293 = vadd.f32 %v285, 1e-05
        %v294 = vadd.f32 %v292, 1e-05
        %v295 = vrcp.pop %v293
        %v296 = vrcp.pop %v294
        %v297 = vmul.f32 %v255, %v295
        %v298 = vmul.f32 %v256, %v296
        %s299 = sld [smem:[#allocation6]]
        %v300 = vstv %s299
        %v301 = vmul.f32 %v297, %v300
        %v302 = vmul.f32 %v298, %v300
        %s303 = sld [smem:[#allocation7]]
        %v304 = vstv %s303
        %v305 = vadd.f32 %v301, %v304
        %v306 = vadd.f32 %v302, %v304
        %307 = vst [vmem:[%s233] sm:$0xff] %v305
        %308 = vst [vmem:[%s233 + $0x8] sm:$0xff] %v306
        %v309 = vld [vmem:[%s238] sm:$0xff]
        %v310 = vld [vmem:[%s238 + $0x8] sm:$0xff]
        %v311 = vsub.f32 %v309, %v253
        %v312 = vsub.f32 %v310, %v254
        %v313 = vmul.f32 %v311, %v295
        %v314 = vmul.f32 %v312, %v296
        %s315 = sld [smem:[#allocation6 + $0x1]]
        %v316 = vstv %s315
        %v317 = vmul.f32 %v313, %v316
        %v318 = vmul.f32 %v314, %v316
        %s319 = sld [smem:[#allocation7 + $0x1]]
        %v320 = vstv %s319
        %v321 = vadd.f32 %v317, %v320
        %v322 = vadd.f32 %v318, %v320
        %s323 = scalar_lea.vmem %s233, 16 [#allocation9]
        %324 = vst [vmem:[%s323] sm:$0xff] %v321
        %325 = vst [vmem:[%s323 + $0x8] sm:$0xff] %v322
        %v326 = vld [vmem:[%s243] sm:$0xff]
        %v327 = vld [vmem:[%s243 + $0x8] sm:$0xff]
        %v328 = vsub.f32 %v326, %v253
        %v329 = vsub.f32 %v327, %v254
        %v330 = vmul.f32 %v328, %v295
        %v331 = vmul.f32 %v329, %v296
        %s332 = sld [smem:[#allocation6 + $0x2]]
        %v333 = vstv %s332
        %v334 = vmul.f32 %v330, %v333
        %v335 = vmul.f32 %v331, %v333
        %s336 = sld [smem:[#allocation7 + $0x2]]
        %v337 = vstv %s336
        %v338 = vadd.f32 %v334, %v337
        %v339 = vadd.f32 %v335, %v337
        %s340 = scalar_lea.vmem %s233, 32 [#allocation9]
        %341 = vst [vmem:[%s340] sm:$0xff] %v338
        %342 = vst [vmem:[%s340 + $0x8] sm:$0xff] %v339
        %v343 = vld [vmem:[%s248] sm:$0xff]
        %v344 = vld [vmem:[%s248 + $0x8] sm:$0xff]
        %v345 = vsub.f32 %v343, %v253
        %v346 = vsub.f32 %v344, %v254
        %v347 = vmul.f32 %v345, %v295
        %v348 = vmul.f32 %v346, %v296
        %s349 = sld [smem:[#allocation6 + $0x3]]
        %v350 = vstv %s349
        %v351 = vmul.f32 %v347, %v350
        %v352 = vmul.f32 %v348, %v350
        %s353 = sld [smem:[#allocation7 + $0x3]]
        %v354 = vstv %s353
        %v355 = vadd.f32 %v351, %v354
        %v356 = vadd.f32 %v352, %v354
        %s357 = scalar_lea.vmem %s233, 48 [#allocation9]
        %358 = vst [vmem:[%s357] sm:$0xff] %v355
        %359 = vst [vmem:[%s357 + $0x8] sm:$0xff] %v356
        %s360 = sand.u32 %s114, 1
        %s361 = scalar_lea.sflag [#allocation4], %s360
        %s362 = sand.u32 %s114, 1
        %s363 = smul.addr %s362, 64
        %s364 = scalar_lea.vmem [#allocation9], %s363
        // Predicated region
        $region45: #{tpu_custom_call.1} parent=31 // pred_check
          %p365 = pneg %p124
        $region46: #{tpu_custom_call.1} parent=31 // pred_check_branch
          %367 = sbr.rel (%p365) target = $region48
        $region47: #{tpu_custom_call.1} parent=31 // pred_region
          %s368 = smul.u32 2, %s27
          %s370 = ssub.s32 1024, 1024
          %371 = vsyncadd %s361, %s370
          %s372 = smul.addr %s26, 8
          %s373 = sadd.s32 %s368, %s372
          %s374 = smul.addr %s373, 128
          %s375 = scalar_lea.hbm %s3, %s374
          %s376 = sshll.u32 %s364, 4
          %s377 = int_to_ptr.vmem [resolvable:$true] %s376
          %382 = dma.vmem_to_hbm [thread:$0]  %s377, 1024, %s375, %s361, 128, 128, 8
        $region48: #{tpu_custom_call.1} parent=31 // pred_fallthru
          _
      $region32: #{tpu_custom_call.1} parent=5 // pred_fallthru
        _
      %p383 = scmp.le.s32.totalorder 2, %s17
      // Predicated region
      $region49: #{tpu_custom_call.1} parent=5 // pred_check
        %p384 = pneg %p383
      $region50: #{tpu_custom_call.1} parent=5 // pred_check_branch
        %386 = sbr.rel (%p384) target = $region52
      $region51: #{tpu_custom_call.1} parent=5 // pred_region
        %s387 = ssub.s32 %s17, 2
        // Predicated region
        $region53: #{tpu_custom_call.1} parent=51 // pred_check
          %p388 = pneg %p130
        $region54: #{tpu_custom_call.1} parent=51 // pred_check_branch
          %390 = sbr.rel (%p388) target = $region56
        $region55: #{tpu_custom_call.1} parent=51 // pred_region
          %s391 = sand.u32 %s115, 1
          %s392 = scalar_lea.sflag [#allocation4], %s391
          %s393 = sand.u32 %s115, 1
          %s394 = smul.addr %s393, 64
          %s395 = scalar_lea.vmem [#allocation9], %s394
          %396 = dma.done %s392, 1024
        $region56: #{tpu_custom_call.1} parent=51 // pred_fallthru
          _
      $region52: #{tpu_custom_call.1} parent=5 // pred_fallthru
        _
    $region6: #{tpu_custom_call.1} parent=1 // loop_footer
      %s21 = sadd.s32 1, %s17
    $region7: #{tpu_custom_call.1} parent=1 // loop_footer_branch
      %16 = sbr.rel target = $region3
    $region8: #{tpu_custom_call.1} parent=1 // loop_exit
      _
    %397 = vsyncpa [#allocation3], 1
    %s398 = scalar_lea.sflag [#allocation3], 1
    %399 = vsyncpa %s398, 1
    %400 = vsyncpa [#allocation4], 1
    %s401 = scalar_lea.sflag [#allocation4], 1
    %402 = vsyncpa %s401, 1
    %403 = vsyncpa [#allocation5], 1
    %s404 = scalar_lea.sflag [#allocation5], 1
    %405 = vsyncpa %s404, 1
    %406 = vsyncpa [#allocation8], 1

</llo_original>
